<compile_context>
chip_gen: v7x
topology: tpu7x:2x2x1
jax: 0.10.0
libtpu: 0.0.40
codegen_flags: <defaults>
</compile_context>

<pallas_src>
import jax
import jax.numpy as jnp
from jax.experimental import pallas as pl
from jax.experimental.pallas import tpu as pltpu


def critic_kernel(state_ref, action_ref, w1_ref, b1_ref, w2_ref, b2_ref,
                  wq_ref, bq_ref, o_ref):
    cd = w1_ref.dtype
    # Fused concat: cast the f32 activation tiles to the compute dtype on the
    # VPU and do ONE K = S + A matmul (single MXU push set instead of two).
    x = jnp.concatenate(
        [state_ref[...].astype(cd), action_ref[...].astype(cd)], axis=-1)
    h1 = jnp.dot(x, w1_ref[...], preferred_element_type=jnp.float32)
    h1 = jnp.maximum(h1 + b1_ref[...], 0.0)                      # ReLU(fc1), f32

    h2 = jnp.dot(h1.astype(w2_ref.dtype), w2_ref[...],
                 preferred_element_type=jnp.float32)
    h2 = jnp.maximum(h2 + b2_ref[...], 0.0)                      # ReLU(fc2), f32

    # 1-wide head on VPU/XLU (no 1-column MXU matmul).  The (tb,) result is
    # relayouted to lanes so the store is lane-dense (no masked (tb,1) stores).
    # Note (v6e): if the full-width reduce ever lands on the critical path
    # behind fc2's MXU pops, split it into per-128-lane partial sums.
    q = jnp.sum(h2 * wq_ref[...], axis=-1) + bq_ref[0, 0]        # (tb,) f32
    o_ref[...] = q.astype(o_ref.dtype)[None, None, :]            # (1, 1, tb)


def _round_up(x, m):
    return ((x + m - 1) // m) * m


def critic_forward(state, action, params, *, compute_dtype=jnp.bfloat16,
                   tile_b=1024):
    """Pallas-backed Critic forward. state: (B, S), action: (B, A) -> (B, 1) f32.

    compute_dtype=bfloat16 is recommended on all TPU generations (v5e/v6e/v7x
    MXUs are native bf16; f32 matmuls go multi-pass).  Accumulation is always
    f32 via preferred_element_type; biases and the head weight stay f32.
    """
    w1, b1, w2, b2, wq, bq = params
    B, S = state.shape
    A = action.shape[1]
    H = w1.shape[1]

    # Weights cast once (tiny); activation tiles are cast inside the kernel.
    w1c = w1.astype(compute_dtype)                    # (S+A, H), fused-K fc1
    w2c = w2.astype(compute_dtype)                    # (H, H)
    b1r = b1.reshape(1, H).astype(jnp.float32)
    b2r = b2.reshape(1, H).astype(jnp.float32)
    wq_row = wq.reshape(1, H).astype(jnp.float32)     # VPU reduce operand
    bq_s = bq.reshape(1, 1).astype(jnp.float32)       # SMEM scalar

    # Batch tiling: >= 2 grid steps when possible (v7x dual-TC sharding of the
    # "parallel" axis), big tiles to amortize per-step overhead, minimal tail
    # padding (Pallas pads the ragged final block itself; padded rows are
    # sliced off below and never contaminate valid rows).
    n_tiles_target = max(2, pl.cdiv(B, tile_b))
    tb = _round_up(pl.cdiv(B, n_tiles_target), 8)
    tb = max(8, min(tb, _round_up(B, 8)))
    num_tiles = pl.cdiv(B, tb)

    # Constant block index -> weights/biases stay VMEM-resident across steps.
    # (The pipeline still allocates double buffers for them; negligible at
    # H=256 — for very large H, single-buffer via pipeline_mode=pl.Buffered(1).)
    const = lambda shape: pl.BlockSpec(shape, lambda i: tuple(0 for _ in shape))

    w_item = jnp.dtype(compute_dtype).itemsize
    flops = 2 * num_tiles * tb * ((S + A) * H + H * H + H)
    bytes_accessed = (
        B * (S + A) * 4                               # activation tiles in (f32)
        + num_tiles * tb * 4                          # q out (f32, lane-dense)
        + ((S + A) * H + H * H) * w_item              # matmul weights
        + (3 * H + 1) * 4                             # biases + wq + bq
    )

    out = pl.pallas_call(
        critic_kernel,
        out_shape=jax.ShapeDtypeStruct((num_tiles, 1, tb), jnp.float32),
        grid=(num_tiles,),
        in_specs=[
            pl.BlockSpec((tb, S), lambda i: (i, 0)),   # state tile (f32)
            pl.BlockSpec((tb, A), lambda i: (i, 0)),   # action tile (f32)
            const((S + A, H)),                         # fc1 weight (fused K)
            const((1, H)),                             # b1
            const((H, H)),                             # fc2 weight
            const((1, H)),                             # b2
            const((1, H)),                             # q weight as a row
            pl.BlockSpec(memory_space=pltpu.MemorySpace.SMEM),  # bq scalar
        ],
        # Lane-dense output: one (1, 1, tb) row of q values per grid step.
        out_specs=pl.BlockSpec((1, 1, tb), lambda i: (i, 0, 0)),
        compiler_params=pltpu.CompilerParams(
            dimension_semantics=("parallel",)),
        cost_estimate=pl.CostEstimate(
            flops=flops, transcendentals=0, bytes_accessed=bytes_accessed),
    )(state, action, w1c, b1r, w2c, b2r, wq_row, bq_s)

    return out.reshape(num_tiles * tb)[:B].reshape(B, 1)


def init_critic_params(key, state_dim, action_dim, hidden_dim=256):
    """Deterministic synthetic init (PyTorch-style uniform fan-in bounds).

    Weights are stored as (in_features, out_features)."""
    d_in = state_dim + action_dim
    ks = jax.random.split(key, 6)

    def uniform(k, shape, fan_in):
        bound = 1.0 / jnp.sqrt(float(fan_in))
        return jax.random.uniform(k, shape, jnp.float32, -bound, bound)

    w1 = uniform(ks[0], (d_in, hidden_dim), d_in)
    b1 = uniform(ks[1], (1, hidden_dim), d_in)
    w2 = uniform(ks[2], (hidden_dim, hidden_dim), hidden_dim)
    b2 = uniform(ks[3], (1, hidden_dim), hidden_dim)
    wq = uniform(ks[4], (hidden_dim, 1), hidden_dim)
    bq = uniform(ks[5], (1, 1), hidden_dim)
    return (w1, b1, w2, b2, wq, bq)


def critic_forward_ref(state, action, params):
    """Plain-JAX reference for correctness check."""
    w1, b1, w2, b2, wq, bq = params
    x = jnp.concatenate([state, action], axis=-1)
    h1 = jax.nn.relu(x @ w1 + b1)
    h2 = jax.nn.relu(h1 @ w2 + b2)
    return h2 @ wq + bq


if __name__ == "__main__":
    key = jax.random.PRNGKey(0)
    k_params, k_state, k_action = jax.random.split(key, 3)

    batch = 8
    state_dim = 16
    action_dim = 8
    hidden_dim = 32

    params = init_critic_params(k_params, state_dim, action_dim, hidden_dim)
    state = jax.random.normal(k_state, (batch, state_dim), jnp.float32)
    action = jax.random.normal(k_action, (batch, action_dim), jnp.float32)

    q_ref = critic_forward_ref(state, action, params)

    # f32 compute path (tight tolerance).
    q = critic_forward(state, action, params, compute_dtype=jnp.float32)
    jax.block_until_ready(q)
    assert q.shape == (batch, 1), q.shape
    assert jnp.allclose(q, q_ref, atol=1e-4, rtol=1e-4), (q, q_ref)

    # bf16 compute path (recommended on v5e/v6e/v7x; f32 accumulation).
    q_bf16 = critic_forward(state, action, params, compute_dtype=jnp.bfloat16)
    jax.block_until_ready(q_bf16)
    assert q_bf16.shape == (batch, 1), q_bf16.shape
    assert jnp.allclose(q_bf16, q_ref, atol=1e-1), (q_bf16, q_ref)

    # Multi-tile + ragged-tail path (2 grid steps, lane-dense output store).
    B2 = 20
    s2 = jax.random.normal(jax.random.PRNGKey(1), (B2, state_dim), jnp.float32)
    a2 = jax.random.normal(jax.random.PRNGKey(2), (B2, action_dim), jnp.float32)
    q2 = critic_forward(s2, a2, params, compute_dtype=jnp.float32)
    jax.block_until_ready(q2)
    q2_ref = critic_forward_ref(s2, a2, params)
    assert q2.shape == (B2, 1), q2.shape
    assert jnp.allclose(q2, q2_ref, atol=1e-4, rtol=1e-4), (q2, q2_ref)

    print("KERNEL_OK")
</pallas_src>

<mosaic_0001>
module attributes {stable_mosaic.version = 11 : i64} {
  func.func @critic_kernel(%arg0: i32, %arg1: memref<8x16xf32, #tpu.memory_space<vmem>>, %arg2: memref<8x8xf32, #tpu.memory_space<vmem>>, %arg3: memref<24x32xf32, #tpu.memory_space<vmem>>, %arg4: memref<1x32xf32, #tpu.memory_space<vmem>>, %arg5: memref<32x32xf32, #tpu.memory_space<vmem>>, %arg6: memref<1x32xf32, #tpu.memory_space<vmem>>, %arg7: memref<1x32xf32, #tpu.memory_space<vmem>>, %arg8: memref<1x1xf32, #tpu.memory_space<smem>>, %arg9: memref<1x1x8xf32, #tpu.memory_space<vmem>>) attributes {dimension_semantics = [#tpu.dimension_semantics<parallel>], iteration_bounds = array<i64: 1>, scalar_prefetch = 0 : i64, scratch_operands = 0 : i64, tpu.core_type = #tpu.core_type<tc>, window_params = [{transform_indices = @transform_0, window_bounds = array<i64: 8, 16>}, {transform_indices = @transform_1, window_bounds = array<i64: 8, 8>}, {pipeline_mode = #tpu.pipeline_mode<synchronous>, transform_indices = @transform_2, window_bounds = array<i64: 24, 32>}, {pipeline_mode = #tpu.pipeline_mode<synchronous>, transform_indices = @transform_3, window_bounds = array<i64: 1, 32>}, {pipeline_mode = #tpu.pipeline_mode<synchronous>, transform_indices = @transform_4, window_bounds = array<i64: 32, 32>}, {pipeline_mode = #tpu.pipeline_mode<synchronous>, transform_indices = @transform_5, window_bounds = array<i64: 1, 32>}, {pipeline_mode = #tpu.pipeline_mode<synchronous>, transform_indices = @transform_6, window_bounds = array<i64: 1, 32>}, {transform_indices = @transform_7, window_bounds = array<i64: 1, 1>}, {transform_indices = @transform_8, window_bounds = array<i64: 1, 1, 8>}]} {
    %c0 = arith.constant 0 : index
    %c0_0 = arith.constant 0 : index
    %0 = vector.load %arg1[%c0, %c0_0] : memref<8x16xf32, #tpu.memory_space<vmem>>, vector<8x16xf32>
    %c0_1 = arith.constant 0 : index
    %c0_2 = arith.constant 0 : index
    %1 = vector.load %arg2[%c0_1, %c0_2] : memref<8x8xf32, #tpu.memory_space<vmem>>, vector<8x8xf32>
    %2 = tpu.concatenate %0, %1 in 1 : vector<8x16xf32>, vector<8x8xf32> -> vector<8x24xf32>
    %c0_3 = arith.constant 0 : index
    %c0_4 = arith.constant 0 : index
    %3 = vector.load %arg3[%c0_3, %c0_4] : memref<24x32xf32, #tpu.memory_space<vmem>>, vector<24x32xf32>
    %cst = arith.constant dense<0.000000e+00> : vector<8x32xf32>
    %4 = tpu.matmul %2, %3, %cst {dimension_numbers = #tpu.dot_dimension_numbers<[1], [0], [0], [1], [0, 0, 1, 1], [], []>} : vector<8x24xf32>, vector<24x32xf32>, vector<8x32xf32> -> vector<8x32xf32>
    %c0_5 = arith.constant 0 : index
    %c0_6 = arith.constant 0 : index
    %5 = vector.load %arg4[%c0_5, %c0_6] : memref<1x32xf32, #tpu.memory_space<vmem>>, vector<1x32xf32>
    %6 = vector.broadcast %5 : vector<1x32xf32> to vector<8x32xf32>
    %7 = arith.addf %4, %6 : vector<8x32xf32>
    %cst_7 = arith.constant 0.000000e+00 : f32
    %8 = vector.broadcast %cst_7 : f32 to vector<8x32xf32>
    %9 = arith.maximumf %7, %8 : vector<8x32xf32>
    %c0_8 = arith.constant 0 : index
    %c0_9 = arith.constant 0 : index
    %10 = vector.load %arg5[%c0_8, %c0_9] : memref<32x32xf32, #tpu.memory_space<vmem>>, vector<32x32xf32>
    %cst_10 = arith.constant dense<0.000000e+00> : vector<8x32xf32>
    %11 = tpu.matmul %9, %10, %cst_10 {dimension_numbers = #tpu.dot_dimension_numbers<[1], [0], [0], [1], [0, 0, 1, 1], [], []>} : vector<8x32xf32>, vector<32x32xf32>, vector<8x32xf32> -> vector<8x32xf32>
    %c0_11 = arith.constant 0 : index
    %c0_12 = arith.constant 0 : index
    %12 = vector.load %arg6[%c0_11, %c0_12] : memref<1x32xf32, #tpu.memory_space<vmem>>, vector<1x32xf32>
    %13 = vector.broadcast %12 : vector<1x32xf32> to vector<8x32xf32>
    %14 = arith.addf %11, %13 : vector<8x32xf32>
    %cst_13 = arith.constant 0.000000e+00 : f32
    %15 = vector.broadcast %cst_13 : f32 to vector<8x32xf32>
    %16 = arith.maximumf %14, %15 : vector<8x32xf32>
    %c0_14 = arith.constant 0 : index
    %c0_15 = arith.constant 0 : index
    %17 = vector.load %arg7[%c0_14, %c0_15] : memref<1x32xf32, #tpu.memory_space<vmem>>, vector<1x32xf32>
    %18 = vector.broadcast %17 : vector<1x32xf32> to vector<8x32xf32>
    %19 = arith.mulf %16, %18 : vector<8x32xf32>
    %cst_16 = arith.constant dense<0.000000e+00> : vector<8xf32>
    %20 = vector.multi_reduction <add>, %19, %cst_16 [1] : vector<8x32xf32> to vector<8xf32>
    %c0_17 = arith.constant 0 : index
    %c0_18 = arith.constant 0 : index
    %21 = memref.load %arg8[%c0_17, %c0_18] : memref<1x1xf32, #tpu.memory_space<smem>>
    %22 = vector.broadcast %21 : f32 to vector<8xf32>
    %23 = arith.addf %20, %22 : vector<8xf32>
    %24 = vector.shape_cast %23 : vector<8xf32> to vector<1x1x8xf32>
    %c0_19 = arith.constant 0 : index
    %c0_20 = arith.constant 0 : index
    %c0_21 = arith.constant 0 : index
    %25 = vector.load %arg9[%c0_19, %c0_20, %c0_21] : memref<1x1x8xf32, #tpu.memory_space<vmem>>, vector<1x1x8xf32>
    tpu.vector_store %arg9[%c0_19, %c0_20, %c0_21], %24 {strides = array<i32>} : memref<1x1x8xf32, #tpu.memory_space<vmem>>, vector<1x1x8xf32>,
    return
  }
  func.func @transform_0(%arg0: i32) -> (i32, i32) {
    %c0_i32 = arith.constant 0 : i32
    %c0_i32_0 = arith.constant 0 : i32
    return %arg0, %c0_i32 : i32, i32
  }
  func.func @transform_1(%arg0: i32) -> (i32, i32) {
    %c0_i32 = arith.constant 0 : i32
    %c0_i32_0 = arith.constant 0 : i32
    return %arg0, %c0_i32 : i32, i32
  }
  func.func @transform_2(%arg0: i32) -> (i32, i32) {
    %c0_i32 = arith.constant 0 : i32
    %c0_i32_0 = arith.constant 0 : i32
    %c0_i32_1 = arith.constant 0 : i32
    return %c0_i32, %c0_i32_0 : i32, i32
  }
  func.func @transform_3(%arg0: i32) -> (i32, i32) {
    %c0_i32 = arith.constant 0 : i32
    %c0_i32_0 = arith.constant 0 : i32
    %c0_i32_1 = arith.constant 0 : i32
    return %c0_i32, %c0_i32_0 : i32, i32
  }
  func.func @transform_4(%arg0: i32) -> (i32, i32) {
    %c0_i32 = arith.constant 0 : i32
    %c0_i32_0 = arith.constant 0 : i32
    %c0_i32_1 = arith.constant 0 : i32
    return %c0_i32, %c0_i32_0 : i32, i32
  }
  func.func @transform_5(%arg0: i32) -> (i32, i32) {
    %c0_i32 = arith.constant 0 : i32
    %c0_i32_0 = arith.constant 0 : i32
    %c0_i32_1 = arith.constant 0 : i32
    return %c0_i32, %c0_i32_0 : i32, i32
  }
  func.func @transform_6(%arg0: i32) -> (i32, i32) {
    %c0_i32 = arith.constant 0 : i32
    %c0_i32_0 = arith.constant 0 : i32
    %c0_i32_1 = arith.constant 0 : i32
    return %c0_i32, %c0_i32_0 : i32, i32
  }
  func.func @transform_7(%arg0: i32) -> (i32, i32) {
    %c0_i32 = arith.constant 0 : i32
    %c0_i32_0 = arith.constant 0 : i32
    %c0_i32_1 = arith.constant 0 : i32
    return %c0_i32, %c0_i32_0 : i32, i32
  }
  func.func @transform_8(%arg0: i32) -> (i32, i32, i32) {
    %c0_i32 = arith.constant 0 : i32
    %c0_i32_0 = arith.constant 0 : i32
    %c0_i32_1 = arith.constant 0 : i32
    return %arg0, %c0_i32, %c0_i32_0 : i32, i32, i32
  }
}

</mosaic_0001>

<llo_original>
// kernel: tpu_custom_call.1
$region0: #{tpu_custom_call.1}
  #allocation0 [shape = 'u32[]', space=smem, size = 0x4, offset = 0x4, fixed_abs, tag = 'smem constant byte address 0x4 - core index']
  #allocation1 [shape = 'u32[144,128]{1,0:T(1,128)}', space=vmem, size = 0x12000, scoped, tag = 'internal scratch']
  #allocation2 [shape = 'f32[1,1]{1,0:T(1,128)S(6)}', space=smem, size = 0x200, scoped, tag = 'scoped memory for tpu_custom_call.1']
  %s0 = inlined_call_operand.hbm [shape: f32[8,16], index: 0, kind: input, shape index: {}]
  %s1 = inlined_call_operand.hbm [shape: f32[8,8], index: 1, kind: input, shape index: {}]
  %s2 = inlined_call_operand.hbm [shape: f32[24,32], index: 2, kind: input, shape index: {}]
  %s3 = inlined_call_operand.vmem [shape: f32[1,32], index: 3, kind: input, shape index: {}]
  %s4 = inlined_call_operand.hbm [shape: f32[32,32], index: 4, kind: input, shape index: {}]
  %s5 = inlined_call_operand.vmem [shape: f32[1,32], index: 5, kind: input, shape index: {}]
  %s6 = inlined_call_operand.vmem [shape: f32[1,32], index: 6, kind: input, shape index: {}]
  %s7 = inlined_call_operand.<no memory space> [shape: f32[1,1], index: 7, kind: input, shape index: {}]
  %s8 = inlined_call_operand.hbm [shape: f32[1,1,8], index: 8, kind: output, shape index: {}]
  %s9 = sld [smem:[#allocation0]]
  $region58: #{tpu_custom_call.1} parent=0
    _
  %s11 = ssub.s32 1, %s9
  %s12 = scalar_select 0, %s11, %s9
  %13 = sst [smem:[#allocation2]] %s7
  $region1: #{tpu_custom_call.1} parent=0
    #allocation3 [shape = 'u8[4096]{0}', space=vmem, size = 0x1000, scoped, tag = 'input window, operand 0, single buffered']
    #allocation4 [shape = 's32[1]{0}', space=sflag, size = 0x4, scoped, tag = 'scoped memory for tpu_custom_call.1']
    #allocation5 [shape = 's32[1]{0}', space=sflag, size = 0x4, scoped, tag = 'scoped memory for tpu_custom_call.1']
    #allocation6 [shape = 'u8[4096]{0}', space=vmem, size = 0x1000, scoped, tag = 'input window, operand 1, single buffered']
    #allocation7 [shape = 's32[1]{0}', space=sflag, size = 0x4, scoped, tag = 'scoped memory for tpu_custom_call.1']
    #allocation8 [shape = 'u8[12288]{0}', space=vmem, size = 0x3000, scoped, tag = 'input window, operand 2, single buffered']
    #allocation9 [shape = 'u8[16384]{0}', space=vmem, size = 0x4000, scoped, tag = 'input window, operand 4, single buffered']
    #allocation10 [shape = 's32[1]{0}', space=sflag, size = 0x4, scoped, tag = 'scoped memory for tpu_custom_call.1']
    #allocation11 [shape = 'u8[512]{0}', space=vmem, size = 0x400, scoped, tag = 'output window, operand 0, single buffered']
    %14 = vsyncpa [#allocation4], 0
    %15 = vsyncpa [#allocation7], 0
    %16 = vsyncpa [#allocation10], 0
    %17 = vsyncpa [#allocation5], 0
    // Predicated region
    $region2: #{tpu_custom_call.1} parent=1 // pred_check
      _
    $region3: #{tpu_custom_call.1} parent=1 // pred_check_branch
      %19 = sbr.rel (0) target = $region5
    $region4: #{tpu_custom_call.1} parent=1 // pred_region
      %s21 = ssub.s32 128, 128
      %22 = vsyncadd [#allocation4], %s21
      %s24 = sshll.u32 [#allocation3], 4
      %s25 = int_to_ptr.vmem [resolvable:$true] %s24
      %27 = dma.hbm_to_vmem [thread:$0]  %s0, 128, %s25, [#allocation4]
    $region5: #{tpu_custom_call.1} parent=1 // pred_fallthru
      _
    // Predicated region
    $region6: #{tpu_custom_call.1} parent=1 // pred_check
      _
    $region7: #{tpu_custom_call.1} parent=1 // pred_check_branch
      %29 = sbr.rel (0) target = $region9
    $region8: #{tpu_custom_call.1} parent=1 // pred_region
      %s31 = ssub.s32 128, 128
      %32 = vsyncadd [#allocation7], %s31
      %s34 = sshll.u32 [#allocation6], 4
      %s35 = int_to_ptr.vmem [resolvable:$true] %s34
      %37 = dma.hbm_to_vmem [thread:$0]  %s1, 128, %s35, [#allocation7]
    $region9: #{tpu_custom_call.1} parent=1 // pred_fallthru
      _
    // Predicated region
    $region10: #{tpu_custom_call.1} parent=1 // pred_check
      _
    $region11: #{tpu_custom_call.1} parent=1 // pred_check_branch
      %39 = sbr.rel (0) target = $region13
    $region12: #{tpu_custom_call.1} parent=1 // pred_region
      %s41 = ssub.s32 384, 384
      %42 = vsyncadd [#allocation7], %s41
      %s43 = sshll.u32 [#allocation8], 4
      %s44 = int_to_ptr.vmem [resolvable:$true] %s43
      %49 = dma.hbm_to_vmem [thread:$0]  %s2, 384, %s44, [#allocation7], 128, 128, 8
    $region13: #{tpu_custom_call.1} parent=1 // pred_fallthru
      _
    // Predicated region
    $region14: #{tpu_custom_call.1} parent=1 // pred_check
      _
    $region15: #{tpu_custom_call.1} parent=1 // pred_check_branch
      %51 = sbr.rel (0) target = $region17
    $region16: #{tpu_custom_call.1} parent=1 // pred_region
      _
    $region17: #{tpu_custom_call.1} parent=1 // pred_fallthru
      _
    // Predicated region
    $region18: #{tpu_custom_call.1} parent=1 // pred_check
      _
    $region19: #{tpu_custom_call.1} parent=1 // pred_check_branch
      %53 = sbr.rel (0) target = $region21
    $region20: #{tpu_custom_call.1} parent=1 // pred_region
      %s55 = ssub.s32 512, 512
      %56 = vsyncadd [#allocation10], %s55
      %s57 = sshll.u32 [#allocation9], 4
      %s58 = int_to_ptr.vmem [resolvable:$true] %s57
      %63 = dma.hbm_to_vmem [thread:$0]  %s4, 512, %s58, [#allocation10], 128, 128, 8
    $region21: #{tpu_custom_call.1} parent=1 // pred_fallthru
      _
    // Predicated region
    $region22: #{tpu_custom_call.1} parent=1 // pred_check
      _
    $region23: #{tpu_custom_call.1} parent=1 // pred_check_branch
      %65 = sbr.rel (0) target = $region25
    $region24: #{tpu_custom_call.1} parent=1 // pred_region
      _
    $region25: #{tpu_custom_call.1} parent=1 // pred_fallthru
      _
    // Predicated region
    $region26: #{tpu_custom_call.1} parent=1 // pred_check
      _
    $region27: #{tpu_custom_call.1} parent=1 // pred_check_branch
      %67 = sbr.rel (0) target = $region29
    $region28: #{tpu_custom_call.1} parent=1 // pred_region
      _
    $region29: #{tpu_custom_call.1} parent=1 // pred_fallthru
      _
    // Predicated region
    $region30: #{tpu_custom_call.1} parent=1 // pred_check
      _
    $region31: #{tpu_custom_call.1} parent=1 // pred_check_branch
      %69 = sbr.rel (0) target = $region33
    $region32: #{tpu_custom_call.1} parent=1 // pred_region
      _
    $region33: #{tpu_custom_call.1} parent=1 // pred_fallthru
      _
    // Predicated region
    $region34: #{tpu_custom_call.1} parent=1 // pred_check
      _
    $region35: #{tpu_custom_call.1} parent=1 // pred_check_branch
      %71 = sbr.rel (0) target = $region37
    $region36: #{tpu_custom_call.1} parent=1 // pred_region
      %72 = dma.done [#allocation4], 128
    $region37: #{tpu_custom_call.1} parent=1 // pred_fallthru
      _
    // Predicated region
    $region38: #{tpu_custom_call.1} parent=1 // pred_check
      _
    $region39: #{tpu_custom_call.1} parent=1 // pred_check_branch
      %74 = sbr.rel (0) target = $region41
    $region40: #{tpu_custom_call.1} parent=1 // pred_region
      %75 = dma.done [#allocation7], 128
    $region41: #{tpu_custom_call.1} parent=1 // pred_fallthru
      _
    // Predicated region
    $region42: #{tpu_custom_call.1} parent=1 // pred_check
      _
    $region43: #{tpu_custom_call.1} parent=1 // pred_check_branch
      %77 = sbr.rel (0) target = $region45
    $region44: #{tpu_custom_call.1} parent=1 // pred_region
      %78 = dma.done [#allocation7], 384
    $region45: #{tpu_custom_call.1} parent=1 // pred_fallthru
      _
    // Predicated region
    $region46: #{tpu_custom_call.1} parent=1 // pred_check
      _
    $region47: #{tpu_custom_call.1} parent=1 // pred_check_branch
      %80 = sbr.rel (0) target = $region49
    $region48: #{tpu_custom_call.1} parent=1 // pred_region
      %81 = dma.done [#allocation10], 512
    $region49: #{tpu_custom_call.1} parent=1 // pred_fallthru
      _
    %v82 = vld [vmem:[#allocation3] sm:$0xff]
    %v83 = vld [vmem:[#allocation6] sm:$0xff]
    %85 = vrot.lane.b32.xlu0 %v83, 16
    %v86 = vpop.permute.xlu0 %85
    %vm88 = vcmask 130048
    %v89 = vsel %vm88, %v82, %v86
    %v90 = vld [vmem:[#allocation8] sm:$0xff]
    %v91 = vld [vmem:[#allocation8 + $0x8] sm:$0xff]
    %v92 = vld [vmem:[#allocation8 + $0x10] sm:$0xff]
    %v93 = vld [vmem:[%s3] sm:$0x1]
    %v95 = vlaneseq
    %v96 = vshrl.u32 %v95, 7
    %v97 = vsub.s32 0, %v96
    %v98 = vrot.slane %v93, %v97
    %vm100 = vcmask 195584
    %v102 = vsel %vm100, %v89, 0
    %104 = vmatprep.subr.mxu0 0.0
    %105 = vmatpush1.msra.mxu0 %v90
    %106 = vmatprep.subr.mxu0 0.0
    %107 = vmatpush1.msra.mxu0 %v91
    %108 = vmatprep.subr.mxu0 0.0
    %109 = vmatpush1.msra.mxu0 %v92
    %110 = vmatprep.subr.mxu0 0.0
    %111 = vmatpush1.msra.mxu0 0.0
    %112 = vmatprep.subr.mxu0 0.0
    %113 = vmatpush1.msra.mxu0 0.0
    %114 = vmatprep.subr.mxu0 0.0
    %115 = vmatpush1.msra.mxu0 0.0
    %116 = vmatprep.subr.mxu0 0.0
    %117 = vmatpush1.msra.mxu0 0.0
    %118 = vmatprep.subr.mxu0 0.0
    %119 = vmatpush1.msra.mxu0 0.0
    %120 = vmatprep.subr.mxu0 0.0
    %121 = vmatpush1.msra.mxu0 0.0
    %122 = vmatprep.subr.mxu0 0.0
    %123 = vmatpush1.msra.mxu0 0.0
    %124 = vmatprep.subr.mxu0 0.0
    %125 = vmatpush1.msra.mxu0 0.0
    %126 = vmatprep.subr.mxu0 0.0
    %127 = vmatpush1.msra.mxu0 0.0
    %128 = vmatprep.subr.mxu0 0.0
    %129 = vmatpush1.msra.mxu0 0.0
    %130 = vmatprep.subr.mxu0 0.0
    %131 = vmatpush1.msra.mxu0 0.0
    %132 = vmatprep.subr.mxu0 0.0
    %133 = vmatpush1.msra.mxu0 0.0
    %134 = vmatprep.subr.mxu0 0.0
    %135 = vmatpush1.msra.mxu0 0.0
    %136 = vmatprep.subr.mxu0 0.0
    %137 = vmatpush1.msra.mxu0 0.0
    %138 = vmatprep.subr.mxu0 0.0
    %139 = vmatpush1.msra.mxu0 0.0
    %140 = vmatprep.subr.mxu0 0.0
    %141 = vmatpush1.msra.mxu0 0.0
    %142 = vmatprep.subr.mxu0 0.0
    %143 = vmatpush1.msra.mxu0 0.0
    %144 = vmatprep.subr.mxu0 0.0
    %145 = vmatpush1.msra.mxu0 0.0
    %146 = vmatprep.subr.mxu0 0.0
    %147 = vmatpush1.msra.mxu0 0.0
    %148 = vmatprep.subr.mxu0 0.0
    %149 = vmatpush1.msra.mxu0 0.0
    %150 = vmatprep.subr.mxu0 0.0
    %151 = vmatpush1.msra.mxu0 0.0
    %152 = vmatprep.subr.mxu0 0.0
    %153 = vmatpush1.msra.mxu0 0.0
    %154 = vmatprep.subr.mxu0 0.0
    %155 = vmatpush1.msra.mxu0 0.0
    %156 = vmatprep.subr.mxu0 0.0
    %157 = vmatpush1.msra.mxu0 0.0
    %158 = vmatprep.subr.mxu0 0.0
    %159 = vmatpush1.msra.mxu0 0.0
    %160 = vmatprep.subr.mxu0 0.0
    %161 = vmatpush1.msra.mxu0 0.0
    %162 = vmatprep.subr.mxu0 0.0
    %163 = vmatpush1.msra.mxu0 0.0
    %164 = vmatprep.subr.mxu0 0.0
    %165 = vmatpush1.msra.mxu0 0.0
    %166 = vmatprep.subr.mxu0 0.0
    %167 = vmatpush1.msra.mxu0 0.0
    %168 = vmatprep.mubr.f32.mxu0 0.0
    %169 = vmatmul.mubr.f32.gmra.mrb[0].mxu0 %v102
    %v170 = vpop.f32.mrb[0].mxu0
    %v171 = vadd.f32 %v98, %v170
    %v172 = vpop.f32.mrb[0].mxu0
    %173 = vdwg.mxu0
    %v174 = vmax.f32 %v171, 0.0
    %v175 = vld [vmem:[#allocation9] sm:$0xff]
    %v176 = vld [vmem:[#allocation9 + $0x8] sm:$0xff]
    %v177 = vld [vmem:[#allocation9 + $0x10] sm:$0xff]
    %v178 = vld [vmem:[#allocation9 + $0x18] sm:$0xff]
    %v179 = vld [vmem:[%s5] sm:$0x1]
    %v181 = vlaneseq
    %v182 = vshrl.u32 %v181, 7
    %v183 = vsub.s32 0, %v182
    %v184 = vrot.slane %v179, %v183
    %vm186 = vcmask 261120
    %v188 = vsel %vm186, %v174, 0
    %190 = vmatprep.subr.mxu0 0.0
    %191 = vmatpush1.msra.mxu0 %v175
    %192 = vmatprep.subr.mxu0 0.0
    %193 = vmatpush1.msra.mxu0 %v176
    %194 = vmatprep.subr.mxu0 0.0
    %195 = vmatpush1.msra.mxu0 %v177
    %196 = vmatprep.subr.mxu0 0.0
    %197 = vmatpush1.msra.mxu0 %v178
    %198 = vmatprep.subr.mxu0 0.0
    %199 = vmatpush1.msra.mxu0 0.0
    %200 = vmatprep.subr.mxu0 0.0
    %201 = vmatpush1.msra.mxu0 0.0
    %202 = vmatprep.subr.mxu0 0.0
    %203 = vmatpush1.msra.mxu0 0.0
    %204 = vmatprep.subr.mxu0 0.0
    %205 = vmatpush1.msra.mxu0 0.0
    %206 = vmatprep.subr.mxu0 0.0
    %207 = vmatpush1.msra.mxu0 0.0
    %208 = vmatprep.subr.mxu0 0.0
    %209 = vmatpush1.msra.mxu0 0.0
    %210 = vmatprep.subr.mxu0 0.0
    %211 = vmatpush1.msra.mxu0 0.0
    %212 = vmatprep.subr.mxu0 0.0
    %213 = vmatpush1.msra.mxu0 0.0
    %214 = vmatprep.subr.mxu0 0.0
    %215 = vmatpush1.msra.mxu0 0.0
    %216 = vmatprep.subr.mxu0 0.0
    %217 = vmatpush1.msra.mxu0 0.0
    %218 = vmatprep.subr.mxu0 0.0
    %219 = vmatpush1.msra.mxu0 0.0
    %220 = vmatprep.subr.mxu0 0.0
    %221 = vmatpush1.msra.mxu0 0.0
    %222 = vmatprep.subr.mxu0 0.0
    %223 = vmatpush1.msra.mxu0 0.0
    %224 = vmatprep.subr.mxu0 0.0
    %225 = vmatpush1.msra.mxu0 0.0
    %226 = vmatprep.subr.mxu0 0.0
    %227 = vmatpush1.msra.mxu0 0.0
    %228 = vmatprep.subr.mxu0 0.0
    %229 = vmatpush1.msra.mxu0 0.0
    %230 = vmatprep.subr.mxu0 0.0
    %231 = vmatpush1.msra.mxu0 0.0
    %232 = vmatprep.subr.mxu0 0.0
    %233 = vmatpush1.msra.mxu0 0.0
    %234 = vmatprep.subr.mxu0 0.0
    %235 = vmatpush1.msra.mxu0 0.0
    %236 = vmatprep.subr.mxu0 0.0
    %237 = vmatpush1.msra.mxu0 0.0
    %238 = vmatprep.subr.mxu0 0.0
    %239 = vmatpush1.msra.mxu0 0.0
    %240 = vmatprep.subr.mxu0 0.0
    %241 = vmatpush1.msra.mxu0 0.0
    %242 = vmatprep.subr.mxu0 0.0
    %243 = vmatpush1.msra.mxu0 0.0
    %244 = vmatprep.subr.mxu0 0.0
    %245 = vmatpush1.msra.mxu0 0.0
    %246 = vmatprep.subr.mxu0 0.0
    %247 = vmatpush1.msra.mxu0 0.0
    %248 = vmatprep.subr.mxu0 0.0
    %249 = vmatpush1.msra.mxu0 0.0
    %250 = vmatprep.subr.mxu0 0.0
    %251 = vmatpush1.msra.mxu0 0.0
    %252 = vmatprep.subr.mxu0 0.0
    %253 = vmatpush1.msra.mxu0 0.0
    %254 = vmatprep.mubr.f32.mxu0 0.0
    %255 = vmatmul.mubr.f32.gmra.mrb[0].mxu0 %v188
    %v256 = vpop.f32.mrb[0].mxu0
    %v257 = vadd.f32 %v184, %v256
    %v258 = vpop.f32.mrb[0].mxu0
    %259 = vdwg.mxu0
    %v260 = vmax.f32 %v257, 0.0
    %v261 = vld [vmem:[%s6] sm:$0x1]
    %v263 = vlaneseq
    %v264 = vshrl.u32 %v263, 7
    %v265 = vsub.s32 0, %v264
    %v266 = vrot.slane %v261, %v265
    %v268 = vmul.f32 %v260, %v266
    %v269 = vsel %vm186, %v268, 0.0
    %270 = vadd.xlane.f32.xlu0 %v269
    %v271 = vpop.xlane.xlu0 %270
    %s272 = sld [smem:[#allocation2]]
    %v273 = vstv %s272
    %v274 = vadd.f32 %v271, %v273
    %v276 = vlaneseq
    %v277 = vand.u32 %v276, 127
    %v278 = vlaneseq
    %v279 = vshrl.u32 %v278, 7
    %v280 = vsub.s32 %v277, %v279
    %v281 = vrot.slane %v274, %v280
    %vm283 = vcmask 57344
    %284 = vst.msk [vmem:[#allocation11] sm:$0x1] %vm283, %v281
    // Predicated region
    $region50: #{tpu_custom_call.1} parent=1 // pred_check
      _
    $region51: #{tpu_custom_call.1} parent=1 // pred_check_branch
      %286 = sbr.rel (0) target = $region53
    $region52: #{tpu_custom_call.1} parent=1 // pred_region
      %s288 = ssub.s32 16, 16
      %289 = vsyncadd [#allocation5], %s288
      %s291 = sshll.u32 [#allocation11], 4
      %s292 = int_to_ptr.vmem [resolvable:$true] %s291
      %294 = dma.vmem_to_hbm [thread:$0]  %s292, 16, %s8, [#allocation5]
    $region53: #{tpu_custom_call.1} parent=1 // pred_fallthru
      _
    // Predicated region
    $region54: #{tpu_custom_call.1} parent=1 // pred_check
      _
    $region55: #{tpu_custom_call.1} parent=1 // pred_check_branch
      %296 = sbr.rel (0) target = $region57
    $region56: #{tpu_custom_call.1} parent=1 // pred_region
      %297 = dma.done [#allocation5], 16
    $region57: #{tpu_custom_call.1} parent=1 // pred_fallthru
      _
    %298 = vsyncpa [#allocation4], 1
    %299 = vsyncpa [#allocation7], 1
    %300 = vsyncpa [#allocation10], 1
    %301 = vsyncpa [#allocation5], 1

</llo_original>
